<compile_context>
chip_gen: v7x
topology: tpu7x:2x2x1
jax: 0.10.0
libtpu: 0.0.40
codegen_flags: <defaults>
</compile_context>

<pallas_src>
import jax
import jax.numpy as jnp
from jax import lax
from jax.experimental import pallas as pl
from jax.experimental.pallas import tpu as pltpu


OUT_PAD = 128  # lane-dense padded output width (col 0 = value, cols 1..6 = policy)


def cubenet_kernel(
    x_ref,            # (TB, 144) bf16
    w1_ref, b1_ref,   # (144, 128) bf16, (1, 128) f32
    w2_ref, b2_ref,   # (128, 64)  bf16, (1, 64)  f32
    wh1_ref, bh1_ref, # (64, 64)   bf16, (1, 64)  f32   (value||policy first layers)
    wh2_ref, bh2_ref, # (64, 128)  bf16, (1, 128) f32   (block-diagonal second layers)
    out_ref,          # (TB, 128)  f32
):
    x = x_ref[...]  # already bf16, no redundant cast

    # Body: Linear(144,128)+ReLU, Linear(128,64)+ReLU (f32 accumulate, f32 epilogue)
    h = jnp.dot(x, w1_ref[...], preferred_element_type=jnp.float32) + b1_ref[...]
    h = jnp.maximum(h, 0.0).astype(jnp.bfloat16)
    h = jnp.dot(h, w2_ref[...], preferred_element_type=jnp.float32) + b2_ref[...]
    h = jnp.maximum(h, 0.0).astype(jnp.bfloat16)

    # Fused heads, first layer: [value_hidden | policy_hidden] = relu(h @ (wv1||wp1) + (bv1||bp1))
    h = jnp.dot(h, wh1_ref[...], preferred_element_type=jnp.float32) + bh1_ref[...]
    h = jnp.maximum(h, 0.0).astype(jnp.bfloat16)

    # Fused heads, second layer: block-diagonal weight -> (TB, 128) lane-dense output.
    out = jnp.dot(h, wh2_ref[...], preferred_element_type=jnp.float32) + bh2_ref[...]

    # Tanh only on the value column (col 0); policy logits (cols 1..6) stay raw.
    col = lax.broadcasted_iota(jnp.int32, out.shape, 1)
    out_ref[...] = jnp.where(col == 0, jnp.tanh(out), out)


def _round_up(a, m):
    return ((a + m - 1) // m) * m


def init_params(key):
    """Deterministic f32 params matching CubeNet's layer shapes.

    Weights stored as (in, out) so y = x @ W + b; biases as (1, out)."""
    dims = [
        (144, 128),  # body linear 1
        (128, 64),   # body linear 2
        (64, 32),    # value head linear 1
        (32, 1),     # value head linear 2
        (64, 32),    # policy head linear 1
        (32, 6),     # policy head linear 2
    ]
    params = []
    for (din, dout) in dims:
        key, kw, kb = jax.random.split(key, 3)
        bound = 1.0 / jnp.sqrt(din)  # mimic torch.nn.Linear default init range
        w = jax.random.uniform(kw, (din, dout), jnp.float32, -bound, bound)
        b = jax.random.uniform(kb, (1, dout), jnp.float32, -bound, bound)
        params.extend([w, b])
    return tuple(params)


def prepare_params(params):
    """Fuse the two heads and cast matmul weights to bf16 (biases stay f32)."""
    (w1, b1, w2, b2, wv1, bv1, wv2, bv2, wp1, bp1, wp2, bp2) = params

    # Head first layers: concatenate along output features -> (64, 64).
    wh1 = jnp.concatenate([wv1, wp1], axis=1)           # (64, 64)
    bh1 = jnp.concatenate([bv1, bp1], axis=1)           # (1, 64)

    # Head second layers: block-diagonal, zero-padded to 128 lanes.
    wh2 = jnp.zeros((64, OUT_PAD), jnp.float32)
    wh2 = wh2.at[0:32, 0:1].set(wv2)                    # value: rows 0..31 -> col 0
    wh2 = wh2.at[32:64, 1:7].set(wp2)                   # policy: rows 32..63 -> cols 1..6
    bh2 = jnp.zeros((1, OUT_PAD), jnp.float32)
    bh2 = bh2.at[:, 0:1].set(bv2)
    bh2 = bh2.at[:, 1:7].set(bp2)

    return (
        w1.astype(jnp.bfloat16), b1,
        w2.astype(jnp.bfloat16), b2,
        wh1.astype(jnp.bfloat16), bh1,
        wh2.astype(jnp.bfloat16), bh2,
    )


def cubenet_forward(x, fused_params, tb=512):
    """x: (B, 144) float array. Returns (value (B,1) f32, policy_logits (B,6) f32)."""
    B = x.shape[0]
    # Batch tile: multiple of 16 (bf16 sublane packing); clamp for small batches.
    tb = int(min(tb, _round_up(B, 16)))
    B_pad = _round_up(B, tb)

    xp = x.astype(jnp.bfloat16)
    if B_pad != B:
        xp = jnp.pad(xp, ((0, B_pad - B), (0, 0)))

    grid = (B_pad // tb,)

    x_spec = pl.BlockSpec((tb, 144), lambda i: (i, 0))
    # Weights/biases: whole-array blocks, constant index_map -> DMA'd once, resident.
    param_specs = [pl.BlockSpec(p.shape, lambda i: (0, 0)) for p in fused_params]
    out_spec = pl.BlockSpec((tb, OUT_PAD), lambda i: (i, 0))

    weight_bytes = sum(int(p.size) * p.dtype.itemsize for p in fused_params)
    cost = pl.CostEstimate(
        flops=2 * B_pad * (144 * 128 + 128 * 64 + 64 * 64 + 64 * OUT_PAD),
        transcendentals=B_pad,
        bytes_accessed=B_pad * 144 * 2 + B_pad * OUT_PAD * 4 + weight_bytes,
    )

    out = pl.pallas_call(
        cubenet_kernel,
        out_shape=jax.ShapeDtypeStruct((B_pad, OUT_PAD), jnp.float32),
        grid=grid,
        in_specs=[x_spec] + param_specs,
        out_specs=out_spec,
        compiler_params=pltpu.CompilerParams(
            dimension_semantics=("parallel",),
        ),
        cost_estimate=cost,
    )(xp, *fused_params)

    value = out[:B, 0:1]
    policy = out[:B, 1:7]
    return value, policy


def reference_forward(x, params):
    """Pure-JAX f32 reference (matches the PyTorch module semantics)."""
    (w1, b1, w2, b2, wv1, bv1, wv2, bv2, wp1, bp1, wp2, bp2) = params
    h = jnp.maximum(x @ w1 + b1, 0.0)
    h = jnp.maximum(h @ w2 + b2, 0.0)
    v = jnp.maximum(h @ wv1 + bv1, 0.0)
    v = jnp.tanh(v @ wv2 + bv2)
    p = jnp.maximum(h @ wp1 + bp1, 0.0)
    p = p @ wp2 + bp2
    return v, p


if __name__ == "__main__":
    key = jax.random.PRNGKey(0)
    key, kx = jax.random.split(key)

    B = 8  # small batch (padded internally to a 16-row tile)
    x = jax.random.normal(kx, (B, 144), jnp.float32)
    params = init_params(key)
    fused_params = prepare_params(params)

    value, policy = cubenet_forward(x, fused_params)
    value, policy = jax.block_until_ready((value, policy))

    # Cross-check against f32 reference; tolerance relaxed for bf16 matmul inputs.
    v_ref, p_ref = reference_forward(x, params)
    assert value.shape == (B, 1) and policy.shape == (B, 6)
    assert jnp.allclose(value, v_ref, atol=5e-2, rtol=5e-2), (
        float(jnp.max(jnp.abs(value - v_ref))))
    assert jnp.allclose(policy, p_ref, atol=5e-2, rtol=5e-2), (
        float(jnp.max(jnp.abs(policy - p_ref))))

    print("KERNEL_OK")
</pallas_src>

<mosaic_0001>
module attributes {stable_mosaic.version = 11 : i64} {
  func.func @cubenet_kernel(%arg0: i32, %arg1: memref<16x144xbf16, #tpu.memory_space<vmem>>, %arg2: memref<144x128xbf16, #tpu.memory_space<vmem>>, %arg3: memref<1x128xf32, #tpu.memory_space<vmem>>, %arg4: memref<128x64xbf16, #tpu.memory_space<vmem>>, %arg5: memref<1x64xf32, #tpu.memory_space<vmem>>, %arg6: memref<64x64xbf16, #tpu.memory_space<vmem>>, %arg7: memref<1x64xf32, #tpu.memory_space<vmem>>, %arg8: memref<64x128xbf16, #tpu.memory_space<vmem>>, %arg9: memref<1x128xf32, #tpu.memory_space<vmem>>, %arg10: memref<16x128xf32, #tpu.memory_space<vmem>>) attributes {dimension_semantics = [#tpu.dimension_semantics<parallel>], iteration_bounds = array<i64: 1>, scalar_prefetch = 0 : i64, scratch_operands = 0 : i64, tpu.core_type = #tpu.core_type<tc>, window_params = [{transform_indices = @transform_0, window_bounds = array<i64: 16, 144>}, {pipeline_mode = #tpu.pipeline_mode<synchronous>, transform_indices = @transform_1, window_bounds = array<i64: 144, 128>}, {pipeline_mode = #tpu.pipeline_mode<synchronous>, transform_indices = @transform_2, window_bounds = array<i64: 1, 128>}, {pipeline_mode = #tpu.pipeline_mode<synchronous>, transform_indices = @transform_3, window_bounds = array<i64: 128, 64>}, {pipeline_mode = #tpu.pipeline_mode<synchronous>, transform_indices = @transform_4, window_bounds = array<i64: 1, 64>}, {pipeline_mode = #tpu.pipeline_mode<synchronous>, transform_indices = @transform_5, window_bounds = array<i64: 64, 64>}, {pipeline_mode = #tpu.pipeline_mode<synchronous>, transform_indices = @transform_6, window_bounds = array<i64: 1, 64>}, {pipeline_mode = #tpu.pipeline_mode<synchronous>, transform_indices = @transform_7, window_bounds = array<i64: 64, 128>}, {pipeline_mode = #tpu.pipeline_mode<synchronous>, transform_indices = @transform_8, window_bounds = array<i64: 1, 128>}, {transform_indices = @transform_9, window_bounds = array<i64: 16, 128>}]} {
    %c0 = arith.constant 0 : index
    %c0_0 = arith.constant 0 : index
    %0 = vector.load %arg1[%c0, %c0_0] : memref<16x144xbf16, #tpu.memory_space<vmem>>, vector<16x144xbf16>
    %c0_1 = arith.constant 0 : index
    %c0_2 = arith.constant 0 : index
    %1 = vector.load %arg2[%c0_1, %c0_2] : memref<144x128xbf16, #tpu.memory_space<vmem>>, vector<144x128xbf16>
    %cst = arith.constant dense<0.000000e+00> : vector<16x128xf32>
    %2 = tpu.matmul %0, %1, %cst {dimension_numbers = #tpu.dot_dimension_numbers<[1], [0], [0], [1], [0, 0, 1, 1], [], []>} : vector<16x144xbf16>, vector<144x128xbf16>, vector<16x128xf32> -> vector<16x128xf32>
    %c0_3 = arith.constant 0 : index
    %c0_4 = arith.constant 0 : index
    %3 = vector.load %arg3[%c0_3, %c0_4] : memref<1x128xf32, #tpu.memory_space<vmem>>, vector<1x128xf32>
    %4 = vector.broadcast %3 : vector<1x128xf32> to vector<16x128xf32>
    %5 = arith.addf %2, %4 : vector<16x128xf32>
    %cst_5 = arith.constant 0.000000e+00 : f32
    %6 = vector.broadcast %cst_5 : f32 to vector<16x128xf32>
    %7 = arith.maximumf %5, %6 : vector<16x128xf32>
    %8 = arith.truncf %7 : vector<16x128xf32> to vector<16x128xbf16>
    %c0_6 = arith.constant 0 : index
    %c0_7 = arith.constant 0 : index
    %9 = vector.load %arg4[%c0_6, %c0_7] : memref<128x64xbf16, #tpu.memory_space<vmem>>, vector<128x64xbf16>
    %cst_8 = arith.constant dense<0.000000e+00> : vector<16x64xf32>
    %10 = tpu.matmul %8, %9, %cst_8 {dimension_numbers = #tpu.dot_dimension_numbers<[1], [0], [0], [1], [0, 0, 1, 1], [], []>} : vector<16x128xbf16>, vector<128x64xbf16>, vector<16x64xf32> -> vector<16x64xf32>
    %c0_9 = arith.constant 0 : index
    %c0_10 = arith.constant 0 : index
    %11 = vector.load %arg5[%c0_9, %c0_10] : memref<1x64xf32, #tpu.memory_space<vmem>>, vector<1x64xf32>
    %12 = vector.broadcast %11 : vector<1x64xf32> to vector<16x64xf32>
    %13 = arith.addf %10, %12 : vector<16x64xf32>
    %cst_11 = arith.constant 0.000000e+00 : f32
    %14 = vector.broadcast %cst_11 : f32 to vector<16x64xf32>
    %15 = arith.maximumf %13, %14 : vector<16x64xf32>
    %16 = arith.truncf %15 : vector<16x64xf32> to vector<16x64xbf16>
    %c0_12 = arith.constant 0 : index
    %c0_13 = arith.constant 0 : index
    %17 = vector.load %arg6[%c0_12, %c0_13] : memref<64x64xbf16, #tpu.memory_space<vmem>>, vector<64x64xbf16>
    %cst_14 = arith.constant dense<0.000000e+00> : vector<16x64xf32>
    %18 = tpu.matmul %16, %17, %cst_14 {dimension_numbers = #tpu.dot_dimension_numbers<[1], [0], [0], [1], [0, 0, 1, 1], [], []>} : vector<16x64xbf16>, vector<64x64xbf16>, vector<16x64xf32> -> vector<16x64xf32>
    %c0_15 = arith.constant 0 : index
    %c0_16 = arith.constant 0 : index
    %19 = vector.load %arg7[%c0_15, %c0_16] : memref<1x64xf32, #tpu.memory_space<vmem>>, vector<1x64xf32>
    %20 = vector.broadcast %19 : vector<1x64xf32> to vector<16x64xf32>
    %21 = arith.addf %18, %20 : vector<16x64xf32>
    %cst_17 = arith.constant 0.000000e+00 : f32
    %22 = vector.broadcast %cst_17 : f32 to vector<16x64xf32>
    %23 = arith.maximumf %21, %22 : vector<16x64xf32>
    %24 = arith.truncf %23 : vector<16x64xf32> to vector<16x64xbf16>
    %c0_18 = arith.constant 0 : index
    %c0_19 = arith.constant 0 : index
    %25 = vector.load %arg8[%c0_18, %c0_19] : memref<64x128xbf16, #tpu.memory_space<vmem>>, vector<64x128xbf16>
    %cst_20 = arith.constant dense<0.000000e+00> : vector<16x128xf32>
    %26 = tpu.matmul %24, %25, %cst_20 {dimension_numbers = #tpu.dot_dimension_numbers<[1], [0], [0], [1], [0, 0, 1, 1], [], []>} : vector<16x64xbf16>, vector<64x128xbf16>, vector<16x128xf32> -> vector<16x128xf32>
    %c0_21 = arith.constant 0 : index
    %c0_22 = arith.constant 0 : index
    %27 = vector.load %arg9[%c0_21, %c0_22] : memref<1x128xf32, #tpu.memory_space<vmem>>, vector<1x128xf32>
    %28 = vector.broadcast %27 : vector<1x128xf32> to vector<16x128xf32>
    %29 = arith.addf %26, %28 : vector<16x128xf32>
    %30 = tpu.iota {dimensions = array<i32: 1>} : vector<16x128xi32>
    %c0_i32 = arith.constant 0 : i32
    %31 = vector.broadcast %c0_i32 : i32 to vector<16x128xi32>
    %32 = arith.cmpi eq, %30, %31 : vector<16x128xi32>
    %33 = math.tanh %29 : vector<16x128xf32>
    %34 = arith.select %32, %33, %29 : vector<16x128xi1>, vector<16x128xf32>
    %c0_23 = arith.constant 0 : index
    %c0_24 = arith.constant 0 : index
    %35 = vector.load %arg10[%c0_23, %c0_24] : memref<16x128xf32, #tpu.memory_space<vmem>>, vector<16x128xf32>
    tpu.vector_store %arg10[%c0_23, %c0_24], %34 {strides = array<i32>} : memref<16x128xf32, #tpu.memory_space<vmem>>, vector<16x128xf32>,
    return
  }
  func.func @transform_0(%arg0: i32) -> (i32, i32) {
    %c0_i32 = arith.constant 0 : i32
    %c0_i32_0 = arith.constant 0 : i32
    return %arg0, %c0_i32 : i32, i32
  }
  func.func @transform_1(%arg0: i32) -> (i32, i32) {
    %c0_i32 = arith.constant 0 : i32
    %c0_i32_0 = arith.constant 0 : i32
    %c0_i32_1 = arith.constant 0 : i32
    return %c0_i32, %c0_i32_0 : i32, i32
  }
  func.func @transform_2(%arg0: i32) -> (i32, i32) {
    %c0_i32 = arith.constant 0 : i32
    %c0_i32_0 = arith.constant 0 : i32
    %c0_i32_1 = arith.constant 0 : i32
    return %c0_i32, %c0_i32_0 : i32, i32
  }
  func.func @transform_3(%arg0: i32) -> (i32, i32) {
    %c0_i32 = arith.constant 0 : i32
    %c0_i32_0 = arith.constant 0 : i32
    %c0_i32_1 = arith.constant 0 : i32
    return %c0_i32, %c0_i32_0 : i32, i32
  }
  func.func @transform_4(%arg0: i32) -> (i32, i32) {
    %c0_i32 = arith.constant 0 : i32
    %c0_i32_0 = arith.constant 0 : i32
    %c0_i32_1 = arith.constant 0 : i32
    return %c0_i32, %c0_i32_0 : i32, i32
  }
  func.func @transform_5(%arg0: i32) -> (i32, i32) {
    %c0_i32 = arith.constant 0 : i32
    %c0_i32_0 = arith.constant 0 : i32
    %c0_i32_1 = arith.constant 0 : i32
    return %c0_i32, %c0_i32_0 : i32, i32
  }
  func.func @transform_6(%arg0: i32) -> (i32, i32) {
    %c0_i32 = arith.constant 0 : i32
    %c0_i32_0 = arith.constant 0 : i32
    %c0_i32_1 = arith.constant 0 : i32
    return %c0_i32, %c0_i32_0 : i32, i32
  }
  func.func @transform_7(%arg0: i32) -> (i32, i32) {
    %c0_i32 = arith.constant 0 : i32
    %c0_i32_0 = arith.constant 0 : i32
    %c0_i32_1 = arith.constant 0 : i32
    return %c0_i32, %c0_i32_0 : i32, i32
  }
  func.func @transform_8(%arg0: i32) -> (i32, i32) {
    %c0_i32 = arith.constant 0 : i32
    %c0_i32_0 = arith.constant 0 : i32
    %c0_i32_1 = arith.constant 0 : i32
    return %c0_i32, %c0_i32_0 : i32, i32
  }
  func.func @transform_9(%arg0: i32) -> (i32, i32) {
    %c0_i32 = arith.constant 0 : i32
    %c0_i32_0 = arith.constant 0 : i32
    return %arg0, %c0_i32 : i32, i32
  }
}

</mosaic_0001>

<llo_original>
// kernel: tpu_custom_call.1
$region0: #{tpu_custom_call.1}
  #allocation0 [shape = 'u32[]', space=smem, size = 0x4, offset = 0x4, fixed_abs, tag = 'smem constant byte address 0x4 - core index']
  #allocation1 [shape = 'u32[144,128]{1,0:T(1,128)}', space=vmem, size = 0x12000, scoped, tag = 'internal scratch']
  %s0 = inlined_call_operand.hbm [shape: bf16[16,144], index: 0, kind: input, shape index: {}]
  %s1 = inlined_call_operand.vmem [shape: bf16[144,128], index: 1, kind: input, shape index: {}]
  %s2 = inlined_call_operand.vmem [shape: f32[1,128], index: 2, kind: input, shape index: {}]
  %s3 = inlined_call_operand.vmem [shape: bf16[128,64], index: 3, kind: input, shape index: {}]
  %s4 = inlined_call_operand.vmem [shape: f32[1,64], index: 4, kind: input, shape index: {}]
  %s5 = inlined_call_operand.vmem [shape: bf16[64,64], index: 5, kind: input, shape index: {}]
  %s6 = inlined_call_operand.vmem [shape: f32[1,64], index: 6, kind: input, shape index: {}]
  %s7 = inlined_call_operand.hbm [shape: bf16[64,128], index: 7, kind: input, shape index: {}]
  %s8 = inlined_call_operand.vmem [shape: f32[1,128], index: 8, kind: input, shape index: {}]
  %s9 = inlined_call_operand.hbm [shape: f32[16,128], index: 9, kind: output, shape index: {}]
  %s10 = sld [smem:[#allocation0]]
  $region54: #{tpu_custom_call.1} parent=0
    _
  %s12 = ssub.s32 1, %s10
  %s13 = scalar_select 0, %s12, %s10
  $region1: #{tpu_custom_call.1} parent=0
    #allocation2 [shape = 'u8[8192]{0}', space=vmem, size = 0x2000, scoped, tag = 'input window, operand 0, single buffered']
    #allocation3 [shape = 's32[1]{0}', space=sflag, size = 0x4, scoped, tag = 'scoped memory for tpu_custom_call.1']
    #allocation4 [shape = 's32[1]{0}', space=sflag, size = 0x4, scoped, tag = 'scoped memory for tpu_custom_call.1']
    #allocation5 [shape = 'u8[16384]{0}', space=vmem, size = 0x4000, scoped, tag = 'input window, operand 7, single buffered']
    #allocation6 [shape = 's32[1]{0}', space=sflag, size = 0x4, scoped, tag = 'scoped memory for tpu_custom_call.1']
    #allocation7 [shape = 'u8[8192]{0}', space=vmem, size = 0x2000, scoped, tag = 'output window, operand 0, single buffered']
    %14 = vsyncpa [#allocation3], 0
    %15 = vsyncpa [#allocation6], 0
    %16 = vsyncpa [#allocation4], 0
    // Predicated region
    $region2: #{tpu_custom_call.1} parent=1 // pred_check
      _
    $region3: #{tpu_custom_call.1} parent=1 // pred_check_branch
      %18 = sbr.rel (0) target = $region5
    $region4: #{tpu_custom_call.1} parent=1 // pred_region
      %s20 = ssub.s32 256, 256
      %21 = vsyncadd [#allocation3], %s20
      %s22 = sshll.u32 [#allocation2], 4
      %s23 = int_to_ptr.vmem [resolvable:$true] %s22
      %28 = dma.hbm_to_vmem [thread:$0]  %s0, 256, %s23, [#allocation3], 128, 128, 8
    $region5: #{tpu_custom_call.1} parent=1 // pred_fallthru
      _
    // Predicated region
    $region6: #{tpu_custom_call.1} parent=1 // pred_check
      _
    $region7: #{tpu_custom_call.1} parent=1 // pred_check_branch
      %30 = sbr.rel (0) target = $region9
    $region8: #{tpu_custom_call.1} parent=1 // pred_region
      _
    $region9: #{tpu_custom_call.1} parent=1 // pred_fallthru
      _
    // Predicated region
    $region10: #{tpu_custom_call.1} parent=1 // pred_check
      _
    $region11: #{tpu_custom_call.1} parent=1 // pred_check_branch
      %32 = sbr.rel (0) target = $region13
    $region12: #{tpu_custom_call.1} parent=1 // pred_region
      _
    $region13: #{tpu_custom_call.1} parent=1 // pred_fallthru
      _
    // Predicated region
    $region14: #{tpu_custom_call.1} parent=1 // pred_check
      _
    $region15: #{tpu_custom_call.1} parent=1 // pred_check_branch
      %34 = sbr.rel (0) target = $region17
    $region16: #{tpu_custom_call.1} parent=1 // pred_region
      _
    $region17: #{tpu_custom_call.1} parent=1 // pred_fallthru
      _
    // Predicated region
    $region18: #{tpu_custom_call.1} parent=1 // pred_check
      _
    $region19: #{tpu_custom_call.1} parent=1 // pred_check_branch
      %36 = sbr.rel (0) target = $region21
    $region20: #{tpu_custom_call.1} parent=1 // pred_region
      _
    $region21: #{tpu_custom_call.1} parent=1 // pred_fallthru
      _
    // Predicated region
    $region22: #{tpu_custom_call.1} parent=1 // pred_check
      _
    $region23: #{tpu_custom_call.1} parent=1 // pred_check_branch
      %38 = sbr.rel (0) target = $region25
    $region24: #{tpu_custom_call.1} parent=1 // pred_region
      _
    $region25: #{tpu_custom_call.1} parent=1 // pred_fallthru
      _
    // Predicated region
    $region26: #{tpu_custom_call.1} parent=1 // pred_check
      _
    $region27: #{tpu_custom_call.1} parent=1 // pred_check_branch
      %40 = sbr.rel (0) target = $region29
    $region28: #{tpu_custom_call.1} parent=1 // pred_region
      _
    $region29: #{tpu_custom_call.1} parent=1 // pred_fallthru
      _
    // Predicated region
    $region30: #{tpu_custom_call.1} parent=1 // pred_check
      _
    $region31: #{tpu_custom_call.1} parent=1 // pred_check_branch
      %42 = sbr.rel (0) target = $region33
    $region32: #{tpu_custom_call.1} parent=1 // pred_region
      %s44 = ssub.s32 512, 512
      %45 = vsyncadd [#allocation6], %s44
      %s46 = sshll.u32 [#allocation5], 4
      %s47 = int_to_ptr.vmem [resolvable:$true] %s46
      %52 = dma.hbm_to_vmem [thread:$0]  %s7, 512, %s47, [#allocation6], 64, 64, 4
    $region33: #{tpu_custom_call.1} parent=1 // pred_fallthru
      _
    // Predicated region
    $region34: #{tpu_custom_call.1} parent=1 // pred_check
      _
    $region35: #{tpu_custom_call.1} parent=1 // pred_check_branch
      %54 = sbr.rel (0) target = $region37
    $region36: #{tpu_custom_call.1} parent=1 // pred_region
      _
    $region37: #{tpu_custom_call.1} parent=1 // pred_fallthru
      _
    // Predicated region
    $region38: #{tpu_custom_call.1} parent=1 // pred_check
      _
    $region39: #{tpu_custom_call.1} parent=1 // pred_check_branch
      %56 = sbr.rel (0) target = $region41
    $region40: #{tpu_custom_call.1} parent=1 // pred_region
      %57 = dma.done [#allocation3], 256
    $region41: #{tpu_custom_call.1} parent=1 // pred_fallthru
      _
    // Predicated region
    $region42: #{tpu_custom_call.1} parent=1 // pred_check
      _
    $region43: #{tpu_custom_call.1} parent=1 // pred_check_branch
      %59 = sbr.rel (0) target = $region45
    $region44: #{tpu_custom_call.1} parent=1 // pred_region
      %60 = dma.done [#allocation6], 512
    $region45: #{tpu_custom_call.1} parent=1 // pred_fallthru
      _
    %v62 = vld [vmem:[#allocation2] sm:$0xff]
    %v63 = vld [vmem:[#allocation2 + $0x8] sm:$0xff]
    %v64 = vld [vmem:[%s1] sm:$0xf]
    %v65 = vld [vmem:[%s1 + $0x4] sm:$0xf]
    %v66 = vld [vmem:[%s1 + $0x8] sm:$0xf]
    %v67 = vld [vmem:[%s1 + $0xc] sm:$0xf]
    %v68 = vld [vmem:[%s1 + $0x10] sm:$0xf]
    %v69 = vld [vmem:[%s1 + $0x14] sm:$0xf]
    %v70 = vld [vmem:[%s1 + $0x18] sm:$0xf]
    %v71 = vld [vmem:[%s1 + $0x1c] sm:$0xf]
    %v72 = vld [vmem:[%s1 + $0x20] sm:$0xf]
    %v73 = vld [vmem:[%s1 + $0x24] sm:$0xf]
    %v74 = vld [vmem:[%s1 + $0x28] sm:$0xf]
    %v75 = vld [vmem:[%s1 + $0x2c] sm:$0xf]
    %v76 = vld [vmem:[%s1 + $0x30] sm:$0xf]
    %v77 = vld [vmem:[%s1 + $0x34] sm:$0xf]
    %v78 = vld [vmem:[%s1 + $0x38] sm:$0xf]
    %v79 = vld [vmem:[%s1 + $0x3c] sm:$0xf]
    %v80 = vld [vmem:[%s1 + $0x40] sm:$0xf]
    %v81 = vld [vmem:[%s1 + $0x44] sm:$0xf]
    %v82 = vld [vmem:[%s2] sm:$0x1]
    %v84 = vlaneseq
    %v85 = vshrl.u32 %v84, 7
    %v86 = vsub.s32 0, %v85
    %v87 = vrot.slane %v82, %v86
    %v91 = vunpack.c.l.b16 %v62
    %v92 = vunpack.c.h.b16 %v62
    %v93 = vunpack.c.l.b16 %v63
    %v94 = vunpack.c.h.b16 %v63
    %v95 = vpack.c.b16 %v93, %v91
    %v96 = vpack.c.b16 %v94, %v92
    %v116 = vunpack.c.l.b16 %v64
    %v117 = vunpack.c.l.b16 %v65
    %v118 = vunpack.c.l.b16 %v66
    %v119 = vunpack.c.l.b16 %v67
    %v120 = vunpack.c.l.b16 %v68
    %v121 = vunpack.c.l.b16 %v69
    %v122 = vunpack.c.l.b16 %v70
    %v123 = vunpack.c.l.b16 %v71
    %v124 = vunpack.c.l.b16 %v72
    %v125 = vunpack.c.l.b16 %v73
    %v126 = vunpack.c.l.b16 %v74
    %v127 = vunpack.c.l.b16 %v75
    %v128 = vunpack.c.l.b16 %v76
    %v129 = vunpack.c.l.b16 %v77
    %v130 = vunpack.c.l.b16 %v78
    %v131 = vunpack.c.l.b16 %v79
    %v132 = vunpack.c.l.b16 %v80
    %v133 = vunpack.c.l.b16 %v81
    %v134 = vpack.c.b16 %v117, %v116
    %v135 = vpack.c.b16 %v119, %v118
    %v136 = vpack.c.b16 %v121, %v120
    %v137 = vpack.c.b16 %v123, %v122
    %v138 = vpack.c.b16 %v125, %v124
    %v139 = vpack.c.b16 %v127, %v126
    %v140 = vpack.c.b16 %v129, %v128
    %v141 = vpack.c.b16 %v131, %v130
    %v142 = vpack.c.b16 %v133, %v132
    %vm152 = vcmask 130048
    %v154 = vsel %vm152, %v96, 0
    %156 = vmatprep.subr.bf16.mxu0 0
    %157 = vmatpush1.bf16.msra.mxu0 %v134
    %158 = vmatprep.subr.bf16.mxu0 0
    %159 = vmatpush1.bf16.msra.mxu0 %v135
    %160 = vmatprep.subr.bf16.mxu0 0
    %161 = vmatpush1.bf16.msra.mxu0 %v136
    %162 = vmatprep.subr.bf16.mxu0 0
    %163 = vmatpush1.bf16.msra.mxu0 %v137
    %164 = vmatprep.subr.bf16.mxu0 0
    %165 = vmatpush1.bf16.msra.mxu0 %v138
    %166 = vmatprep.subr.bf16.mxu0 0
    %167 = vmatpush1.bf16.msra.mxu0 %v139
    %168 = vmatprep.subr.bf16.mxu0 0
    %169 = vmatpush1.bf16.msra.mxu0 %v140
    %170 = vmatprep.subr.bf16.mxu0 0
    %171 = vmatpush1.bf16.msra.mxu0 %v141
    %172 = vmatprep.subr.bf16.mxu0 0
    %173 = vmatpush1.bf16.msra.mxu0 %v142
    %174 = vmatprep.subr.bf16.mxu0 0
    %175 = vmatpush1.bf16.msra.mxu0 0
    %176 = vmatprep.subr.bf16.mxu0 0
    %177 = vmatpush1.bf16.msra.mxu0 0
    %178 = vmatprep.subr.bf16.mxu0 0
    %179 = vmatpush1.bf16.msra.mxu0 0
    %180 = vmatprep.subr.bf16.mxu0 0
    %181 = vmatpush1.bf16.msra.mxu0 0
    %182 = vmatprep.subr.bf16.mxu0 0
    %183 = vmatpush1.bf16.msra.mxu0 0
    %184 = vmatprep.subr.bf16.mxu0 0
    %185 = vmatpush1.bf16.msra.mxu0 0
    %186 = vmatprep.subr.bf16.mxu0 0
    %187 = vmatpush1.bf16.msra.mxu0 0
    %188 = vmatprep.mubr.bf16.mxu0 %v154
    %189 = vmatmul.mubr.bf16.gmra.mrb[0].mxu0 %v95
    %v190 = vpop.f32.mrb[0].mxu0
    %v191 = vadd.f32 %v87, %v190
    %v192 = vpop.f32.mrb[0].mxu0
    %v193 = vpop.f32.mrb[0].mxu0
    %v194 = vadd.f32 %v87, %v193
    %v195 = vpop.f32.mrb[0].mxu0
    %196 = vdwg.mxu0
    %v197 = vmax.f32 %v191, 0.0
    %v198 = vmax.f32 %v194, 0.0
    %v199 = vpack.c.bf16 %v198, %v197
    %v200 = vld [vmem:[%s3] sm:$0xf]
    %v201 = vld [vmem:[%s3 + $0x4] sm:$0xf]
    %v202 = vld [vmem:[%s3 + $0x8] sm:$0xf]
    %v203 = vld [vmem:[%s3 + $0xc] sm:$0xf]
    %v204 = vld [vmem:[%s3 + $0x10] sm:$0xf]
    %v205 = vld [vmem:[%s3 + $0x14] sm:$0xf]
    %v206 = vld [vmem:[%s3 + $0x18] sm:$0xf]
    %v207 = vld [vmem:[%s3 + $0x1c] sm:$0xf]
    %v208 = vld [vmem:[%s3 + $0x20] sm:$0xf]
    %v209 = vld [vmem:[%s3 + $0x24] sm:$0xf]
    %v210 = vld [vmem:[%s3 + $0x28] sm:$0xf]
    %v211 = vld [vmem:[%s3 + $0x2c] sm:$0xf]
    %v212 = vld [vmem:[%s3 + $0x30] sm:$0xf]
    %v213 = vld [vmem:[%s3 + $0x34] sm:$0xf]
    %v214 = vld [vmem:[%s3 + $0x38] sm:$0xf]
    %v215 = vld [vmem:[%s3 + $0x3c] sm:$0xf]
    %v216 = vld [vmem:[%s4] sm:$0x1]
    %v218 = vlaneseq
    %v219 = vshrl.u32 %v218, 7
    %v220 = vsub.s32 0, %v219
    %v221 = vrot.slane %v216, %v220
    %v239 = vunpack.c.l.b16 %v200
    %v240 = vunpack.c.l.b16 %v201
    %v241 = vunpack.c.l.b16 %v202
    %v242 = vunpack.c.l.b16 %v203
    %v243 = vunpack.c.l.b16 %v204
    %v244 = vunpack.c.l.b16 %v205
    %v245 = vunpack.c.l.b16 %v206
    %v246 = vunpack.c.l.b16 %v207
    %v247 = vunpack.c.l.b16 %v208
    %v248 = vunpack.c.l.b16 %v209
    %v249 = vunpack.c.l.b16 %v210
    %v250 = vunpack.c.l.b16 %v211
    %v251 = vunpack.c.l.b16 %v212
    %v252 = vunpack.c.l.b16 %v213
    %v253 = vunpack.c.l.b16 %v214
    %v254 = vunpack.c.l.b16 %v215
    %v255 = vpack.c.b16 %v240, %v239
    %v256 = vpack.c.b16 %v242, %v241
    %v257 = vpack.c.b16 %v244, %v243
    %v258 = vpack.c.b16 %v246, %v245
    %v259 = vpack.c.b16 %v248, %v247
    %v260 = vpack.c.b16 %v250, %v249
    %v261 = vpack.c.b16 %v252, %v251
    %v262 = vpack.c.b16 %v254, %v253
    %271 = vmatprep.subr.bf16.mxu0 0
    %272 = vmatpush1.bf16.msra.mxu0 %v255
    %273 = vmatprep.subr.bf16.mxu0 0
    %274 = vmatpush1.bf16.msra.mxu0 %v256
    %275 = vmatprep.subr.bf16.mxu0 0
    %276 = vmatpush1.bf16.msra.mxu0 %v257
    %277 = vmatprep.subr.bf16.mxu0 0
    %278 = vmatpush1.bf16.msra.mxu0 %v258
    %279 = vmatprep.subr.bf16.mxu0 0
    %280 = vmatpush1.bf16.msra.mxu0 %v259
    %281 = vmatprep.subr.bf16.mxu0 0
    %282 = vmatpush1.bf16.msra.mxu0 %v260
    %283 = vmatprep.subr.bf16.mxu0 0
    %284 = vmatpush1.bf16.msra.mxu0 %v261
    %285 = vmatprep.subr.bf16.mxu0 0
    %286 = vmatpush1.bf16.msra.mxu0 %v262
    %287 = vmatprep.subr.bf16.mxu0 0
    %288 = vmatpush1.bf16.msra.mxu0 0
    %289 = vmatprep.subr.bf16.mxu0 0
    %290 = vmatpush1.bf16.msra.mxu0 0
    %291 = vmatprep.subr.bf16.mxu0 0
    %292 = vmatpush1.bf16.msra.mxu0 0
    %293 = vmatprep.subr.bf16.mxu0 0
    %294 = vmatpush1.bf16.msra.mxu0 0
    %295 = vmatprep.subr.bf16.mxu0 0
    %296 = vmatpush1.bf16.msra.mxu0 0
    %297 = vmatprep.subr.bf16.mxu0 0
    %298 = vmatpush1.bf16.msra.mxu0 0
    %299 = vmatprep.subr.bf16.mxu0 0
    %300 = vmatpush1.bf16.msra.mxu0 0
    %301 = vmatprep.subr.bf16.mxu0 0
    %302 = vmatpush1.bf16.msra.mxu0 0
    %303 = vmatprep.mubr.bf16.mxu0 0
    %304 = vmatmul.mubr.bf16.gmra.mrb[0].mxu0 %v199
    %v305 = vpop.f32.mrb[0].mxu0
    %v306 = vadd.f32 %v221, %v305
    %v307 = vpop.f32.mrb[0].mxu0
    %v308 = vpop.f32.mrb[0].mxu0
    %v309 = vadd.f32 %v221, %v308
    %v310 = vpop.f32.mrb[0].mxu0
    %311 = vdwg.mxu0
    %v312 = vmax.f32 %v306, 0.0
    %v313 = vmax.f32 %v309, 0.0
    %v314 = vpack.c.bf16 %v313, %v312
    %v315 = vld [vmem:[%s5] sm:$0xf]
    %v316 = vld [vmem:[%s5 + $0x4] sm:$0xf]
    %v317 = vld [vmem:[%s5 + $0x8] sm:$0xf]
    %v318 = vld [vmem:[%s5 + $0xc] sm:$0xf]
    %v319 = vld [vmem:[%s5 + $0x10] sm:$0xf]
    %v320 = vld [vmem:[%s5 + $0x14] sm:$0xf]
    %v321 = vld [vmem:[%s5 + $0x18] sm:$0xf]
    %v322 = vld [vmem:[%s5 + $0x1c] sm:$0xf]
    %v323 = vld [vmem:[%s6] sm:$0x1]
    %v325 = vlaneseq
    %v326 = vshrl.u32 %v325, 7
    %v327 = vsub.s32 0, %v326
    %v328 = vrot.slane %v323, %v327
    %v338 = vunpack.c.l.b16 %v315
    %v339 = vunpack.c.l.b16 %v316
    %v340 = vunpack.c.l.b16 %v317
    %v341 = vunpack.c.l.b16 %v318
    %v342 = vunpack.c.l.b16 %v319
    %v343 = vunpack.c.l.b16 %v320
    %v344 = vunpack.c.l.b16 %v321
    %v345 = vunpack.c.l.b16 %v322
    %v346 = vpack.c.b16 %v339, %v338
    %v347 = vpack.c.b16 %v341, %v340
    %v348 = vpack.c.b16 %v343, %v342
    %v349 = vpack.c.b16 %v345, %v344
    %vm354 = vcmask 523264
    %v356 = vsel %vm354, %v314, 0
    %358 = vmatprep.subr.bf16.mxu0 0
    %359 = vmatpush1.bf16.msra.mxu0 %v346
    %360 = vmatprep.subr.bf16.mxu0 0
    %361 = vmatpush1.bf16.msra.mxu0 %v347
    %362 = vmatprep.subr.bf16.mxu0 0
    %363 = vmatpush1.bf16.msra.mxu0 %v348
    %364 = vmatprep.subr.bf16.mxu0 0
    %365 = vmatpush1.bf16.msra.mxu0 %v349
    %366 = vmatprep.subr.bf16.mxu0 0
    %367 = vmatpush1.bf16.msra.mxu0 0
    %368 = vmatprep.subr.bf16.mxu0 0
    %369 = vmatpush1.bf16.msra.mxu0 0
    %370 = vmatprep.subr.bf16.mxu0 0
    %371 = vmatpush1.bf16.msra.mxu0 0
    %372 = vmatprep.subr.bf16.mxu0 0
    %373 = vmatpush1.bf16.msra.mxu0 0
    %374 = vmatprep.subr.bf16.mxu0 0
    %375 = vmatpush1.bf16.msra.mxu0 0
    %376 = vmatprep.subr.bf16.mxu0 0
    %377 = vmatpush1.bf16.msra.mxu0 0
    %378 = vmatprep.subr.bf16.mxu0 0
    %379 = vmatpush1.bf16.msra.mxu0 0
    %380 = vmatprep.subr.bf16.mxu0 0
    %381 = vmatpush1.bf16.msra.mxu0 0
    %382 = vmatprep.subr.bf16.mxu0 0
    %383 = vmatpush1.bf16.msra.mxu0 0
    %384 = vmatprep.subr.bf16.mxu0 0
    %385 = vmatpush1.bf16.msra.mxu0 0
    %386 = vmatprep.subr.bf16.mxu0 0
    %387 = vmatpush1.bf16.msra.mxu0 0
    %388 = vmatprep.subr.bf16.mxu0 0
    %389 = vmatpush1.bf16.msra.mxu0 0
    %390 = vmatprep.mubr.bf16.mxu0 0
    %391 = vmatmul.mubr.bf16.gmra.mrb[0].mxu0 %v356
    %v392 = vpop.f32.mrb[0].mxu0
    %v393 = vadd.f32 %v328, %v392
    %v394 = vpop.f32.mrb[0].mxu0
    %v395 = vpop.f32.mrb[0].mxu0
    %v396 = vadd.f32 %v328, %v395
    %v397 = vpop.f32.mrb[0].mxu0
    %398 = vdwg.mxu0
    %v399 = vmax.f32 %v393, 0.0
    %v400 = vmax.f32 %v396, 0.0
    %v401 = vpack.c.bf16 %v400, %v399
    %v402 = vld [vmem:[#allocation5] sm:$0xf]
    %v403 = vld [vmem:[#allocation5 + $0x4] sm:$0xf]
    %v404 = vld [vmem:[#allocation5 + $0x8] sm:$0xf]
    %v405 = vld [vmem:[#allocation5 + $0xc] sm:$0xf]
    %v406 = vld [vmem:[#allocation5 + $0x10] sm:$0xf]
    %v407 = vld [vmem:[#allocation5 + $0x14] sm:$0xf]
    %v408 = vld [vmem:[#allocation5 + $0x18] sm:$0xf]
    %v409 = vld [vmem:[#allocation5 + $0x1c] sm:$0xf]
    %v410 = vld [vmem:[%s8] sm:$0x1]
    %v412 = vlaneseq
    %v413 = vshrl.u32 %v412, 7
    %v414 = vsub.s32 0, %v413
    %v415 = vrot.slane %v410, %v414
    %v425 = vunpack.c.l.b16 %v402
    %v426 = vunpack.c.l.b16 %v403
    %v427 = vunpack.c.l.b16 %v404
    %v428 = vunpack.c.l.b16 %v405
    %v429 = vunpack.c.l.b16 %v406
    %v430 = vunpack.c.l.b16 %v407
    %v431 = vunpack.c.l.b16 %v408
    %v432 = vunpack.c.l.b16 %v409
    %v433 = vpack.c.b16 %v426, %v425
    %v434 = vpack.c.b16 %v428, %v427
    %v435 = vpack.c.b16 %v430, %v429
    %v436 = vpack.c.b16 %v432, %v431
    %v442 = vsel %vm354, %v401, 0
    %444 = vmatprep.subr.bf16.mxu0 0
    %445 = vmatpush1.bf16.msra.mxu0 %v433
    %446 = vmatprep.subr.bf16.mxu0 0
    %447 = vmatpush1.bf16.msra.mxu0 %v434
    %448 = vmatprep.subr.bf16.mxu0 0
    %449 = vmatpush1.bf16.msra.mxu0 %v435
    %450 = vmatprep.subr.bf16.mxu0 0
    %451 = vmatpush1.bf16.msra.mxu0 %v436
    %452 = vmatprep.subr.bf16.mxu0 0
    %453 = vmatpush1.bf16.msra.mxu0 0
    %454 = vmatprep.subr.bf16.mxu0 0
    %455 = vmatpush1.bf16.msra.mxu0 0
    %456 = vmatprep.subr.bf16.mxu0 0
    %457 = vmatpush1.bf16.msra.mxu0 0
    %458 = vmatprep.subr.bf16.mxu0 0
    %459 = vmatpush1.bf16.msra.mxu0 0
    %460 = vmatprep.subr.bf16.mxu0 0
    %461 = vmatpush1.bf16.msra.mxu0 0
    %462 = vmatprep.subr.bf16.mxu0 0
    %463 = vmatpush1.bf16.msra.mxu0 0
    %464 = vmatprep.subr.bf16.mxu0 0
    %465 = vmatpush1.bf16.msra.mxu0 0
    %466 = vmatprep.subr.bf16.mxu0 0
    %467 = vmatpush1.bf16.msra.mxu0 0
    %468 = vmatprep.subr.bf16.mxu0 0
    %469 = vmatpush1.bf16.msra.mxu0 0
    %470 = vmatprep.subr.bf16.mxu0 0
    %471 = vmatpush1.bf16.msra.mxu0 0
    %472 = vmatprep.subr.bf16.mxu0 0
    %473 = vmatpush1.bf16.msra.mxu0 0
    %474 = vmatprep.subr.bf16.mxu0 0
    %475 = vmatpush1.bf16.msra.mxu0 0
    %476 = vmatprep.mubr.bf16.mxu0 0
    %477 = vmatmul.mubr.bf16.gmra.mrb[0].mxu0 %v442
    %v478 = vpop.f32.mrb[0].mxu0
    %v479 = vadd.f32 %v415, %v478
    %v480 = vpop.f32.mrb[0].mxu0
    %v481 = vpop.f32.mrb[0].mxu0
    %v482 = vadd.f32 %v415, %v481
    %v483 = vpop.f32.mrb[0].mxu0
    %484 = vdwg.mxu0
    %v485 = vlaneseq
    %v486 = vand.u32 %v485, 127
    %vm487 = vcmp.eq.s32.totalorder %v486, 0
    %v488 = vtanh.pop %v479
    %v489 = vtanh.pop %v482
    %v490 = vsel %vm487, %v488, %v479
    %v491 = vsel %vm487, %v489, %v482
    %492 = vst [vmem:[#allocation7] sm:$0xff] %v490
    %493 = vst [vmem:[#allocation7 + $0x8] sm:$0xff] %v491
    // Predicated region
    $region46: #{tpu_custom_call.1} parent=1 // pred_check
      _
    $region47: #{tpu_custom_call.1} parent=1 // pred_check_branch
      %495 = sbr.rel (0) target = $region49
    $region48: #{tpu_custom_call.1} parent=1 // pred_region
      %s497 = ssub.s32 256, 256
      %498 = vsyncadd [#allocation4], %s497
      %s499 = sshll.u32 [#allocation7], 4
      %s500 = int_to_ptr.vmem [resolvable:$true] %s499
      %505 = dma.vmem_to_hbm [thread:$0]  %s500, 256, %s9, [#allocation4], 128, 128, 8
    $region49: #{tpu_custom_call.1} parent=1 // pred_fallthru
      _
    // Predicated region
    $region50: #{tpu_custom_call.1} parent=1 // pred_check
      _
    $region51: #{tpu_custom_call.1} parent=1 // pred_check_branch
      %507 = sbr.rel (0) target = $region53
    $region52: #{tpu_custom_call.1} parent=1 // pred_region
      %508 = dma.done [#allocation4], 256
    $region53: #{tpu_custom_call.1} parent=1 // pred_fallthru
      _
    %509 = vsyncpa [#allocation3], 1
    %510 = vsyncpa [#allocation6], 1
    %511 = vsyncpa [#allocation4], 1

</llo_original>
